<compile_context>
chip_gen: v5e
topology: v5e:2x2
jax: 0.10.0
libtpu: 0.0.40
codegen_flags: <defaults>
</compile_context>

<pallas_src>
import jax
import jax.numpy as jnp
from jax.experimental import pallas as pl
from jax.experimental.pallas import tpu as pltpu

HIDDEN = 64   # hard-coded in the PyTorch module's __init__
LANE = 128    # TPU lane width; output columns padded to this for unmasked stores


def _round_up(n, m):
    return (n + m - 1) // m * m


def qnetwork_kernel(x_ref, w1_ref, b1_ref, w2_ref, b2_ref, w3_ref, b3_ref, o_ref):
    # One batch tile per grid step. Three MXU matmuls (bf16 in, f32 accumulate),
    # bias add + ReLU on the f32 accumulator (VPU slots are free under the MXU).
    x = x_ref[...]
    h1 = jnp.dot(x, w1_ref[...], preferred_element_type=jnp.float32) + b1_ref[...]
    h1 = jnp.maximum(h1, 0.0)
    h2 = jnp.dot(h1.astype(w2_ref.dtype), w2_ref[...],
                 preferred_element_type=jnp.float32) + b2_ref[...]
    h2 = jnp.maximum(h2, 0.0)
    out = jnp.dot(h2.astype(w3_ref.dtype), w3_ref[...],
                  preferred_element_type=jnp.float32) + b3_ref[...]
    o_ref[...] = out.astype(o_ref.dtype)
    # TODO(synk): for the B~1 acting path, a fused argmax-over-actions output
    # (int32 index) would remove the tiny [B, A] HBM writeback entirely.


def qnetwork_forward(x, params, output_size, *, tile_b=512):
    """x: [B, input_size] float32/bfloat16. params from init_qnetwork_params.
    Returns [B, output_size] float32 Q-values."""
    B, in_f = x.shape
    out_pad = params["W3"].shape[1]          # already padded to a multiple of 128

    # Batch tile: multiple of 8 (sublane), capped so tiny batches don't over-pad.
    # 512 rows is comfortable on v5e/v6e (128 MiB VMEM) and v7x (64 MiB VMEM).
    tile_b = min(tile_b, _round_up(B, 8))
    b_pad = _round_up(B, tile_b)
    if b_pad != B:
        x = jnp.pad(x, ((0, b_pad - B), (0, 0)))
    x = x.astype(jnp.bfloat16)               # halve streamed HBM bytes

    grid = (pl.cdiv(b_pad, tile_b),)

    w1, b1 = params["W1"], params["b1"]
    w2, b2 = params["W2"], params["b2"]
    w3, b3 = params["W3"], params["b3"]

    # Explicit VMEM budget: double-buffered streamed tiles + resident weights
    # + live activations + slack. Stays far below even v7x's 64 MiB.
    w_bytes = sum(int(a.size) * a.dtype.itemsize for a in (w1, b1, w2, b2, w3, b3))
    stream_bytes = 2 * (tile_b * in_f * 2 + tile_b * out_pad * 4)
    act_bytes = 2 * tile_b * HIDDEN * 4
    vmem_limit = min(96 << 20, max(8 << 20, 2 * w_bytes + stream_bytes + act_bytes + (2 << 20)))

    out = pl.pallas_call(
        qnetwork_kernel,
        out_shape=jax.ShapeDtypeStruct((b_pad, out_pad), jnp.float32),
        grid=grid,
        in_specs=[
            # streamed per batch tile
            pl.BlockSpec((tile_b, in_f), lambda i: (i, 0)),
            # weights/biases: constant block index => loaded once, VMEM-resident
            pl.BlockSpec(w1.shape, lambda i: (0, 0)),
            pl.BlockSpec(b1.shape, lambda i: (0, 0)),
            pl.BlockSpec(w2.shape, lambda i: (0, 0)),
            pl.BlockSpec(b2.shape, lambda i: (0, 0)),
            pl.BlockSpec(w3.shape, lambda i: (0, 0)),
            pl.BlockSpec(b3.shape, lambda i: (0, 0)),
        ],
        out_specs=pl.BlockSpec((tile_b, out_pad), lambda i: (i, 0)),
        compiler_params=pltpu.CompilerParams(
            dimension_semantics=("parallel",),   # v7x: shard batch across both TCs
            vmem_limit_bytes=int(vmem_limit),
        ),
    )(x, w1, b1, w2, b2, w3, b3)

    return out[:B, :output_size]


def init_qnetwork_params(key, input_size, output_size, hidden_size=HIDDEN):
    """Mirrors PyTorch nn.Linear default init U(-1/sqrt(fan_in), 1/sqrt(fan_in)).
    Weights stored as [in, out] (pre-transposed for x @ W), cast to bf16 for the
    MXU; biases kept f32 (added to the f32 accumulator). The last layer's columns
    are zero-padded to 128 so the kernel's output is lane-dense."""
    keys = jax.random.split(key, 6)

    def linear(kw, kb, fan_in, fan_out, pad_out=None):
        bound = 1.0 / jnp.sqrt(jnp.float32(fan_in))
        w = jax.random.uniform(kw, (fan_in, fan_out), jnp.float32, -bound, bound)
        b = jax.random.uniform(kb, (1, fan_out), jnp.float32, -bound, bound)
        if pad_out is not None and pad_out > fan_out:
            w = jnp.pad(w, ((0, 0), (0, pad_out - fan_out)))
            b = jnp.pad(b, ((0, 0), (0, pad_out - fan_out)))
        return w.astype(jnp.bfloat16), b.astype(jnp.float32)

    out_pad = _round_up(max(output_size, 1), LANE)
    w1, b1 = linear(keys[0], keys[1], input_size, hidden_size)
    w2, b2 = linear(keys[2], keys[3], hidden_size, hidden_size)
    w3, b3 = linear(keys[4], keys[5], hidden_size, output_size, pad_out=out_pad)
    return {"W1": w1, "b1": b1, "W2": w2, "b2": b2, "W3": w3, "b3": b3}


def qnetwork_reference(x, params, output_size):
    """Pure-JAX reference with the same mixed precision (bf16 MXU operands,
    f32 accumulation) as the kernel."""
    xb = x.astype(jnp.bfloat16)
    h1 = jnp.maximum(
        jnp.dot(xb, params["W1"], preferred_element_type=jnp.float32) + params["b1"], 0.0)
    h2 = jnp.maximum(
        jnp.dot(h1.astype(jnp.bfloat16), params["W2"],
                preferred_element_type=jnp.float32) + params["b2"], 0.0)
    out = jnp.dot(h2.astype(jnp.bfloat16), params["W3"],
                  preferred_element_type=jnp.float32) + params["b3"]
    return out[:, :output_size]


if __name__ == "__main__":
    key = jax.random.PRNGKey(0)
    k_x, k_p = jax.random.split(key)

    batch = 2
    input_size = 16   # flattened state dim
    output_size = 4   # number of discrete actions

    x = jax.random.normal(k_x, (batch, input_size), dtype=jnp.float32)
    params = init_qnetwork_params(k_p, input_size, output_size)

    out = qnetwork_forward(x, params, output_size)
    out = jax.block_until_ready(out)

    ref = qnetwork_reference(x, params, output_size)
    assert out.shape == (batch, output_size), out.shape
    assert jnp.allclose(out, ref, atol=1e-2, rtol=1e-2), (
        f"max abs err {jnp.max(jnp.abs(out - ref))}")

    # Also sanity-check a batch larger than one tile to exercise the grid path.
    big_b = 1040  # not a multiple of the 512-row tile -> exercises padding too
    xb = jax.random.normal(jax.random.PRNGKey(1), (big_b, input_size), jnp.float32)
    out_big = jax.block_until_ready(qnetwork_forward(xb, params, output_size))
    ref_big = qnetwork_reference(xb, params, output_size)
    assert out_big.shape == (big_b, output_size)
    assert jnp.allclose(out_big, ref_big, atol=1e-2, rtol=1e-2), (
        f"max abs err {jnp.max(jnp.abs(out_big - ref_big))}")

    print("KERNEL_OK")
</pallas_src>

<mosaic_0001>
module attributes {stable_mosaic.version = 11 : i64} {
  func.func @qnetwork_kernel(%arg0: i32, %arg1: memref<8x16xbf16, #tpu.memory_space<vmem>>, %arg2: memref<16x64xbf16, #tpu.memory_space<vmem>>, %arg3: memref<1x64xf32, #tpu.memory_space<vmem>>, %arg4: memref<64x64xbf16, #tpu.memory_space<vmem>>, %arg5: memref<1x64xf32, #tpu.memory_space<vmem>>, %arg6: memref<64x128xbf16, #tpu.memory_space<vmem>>, %arg7: memref<1x128xf32, #tpu.memory_space<vmem>>, %arg8: memref<8x128xf32, #tpu.memory_space<vmem>>) attributes {dimension_semantics = [#tpu.dimension_semantics<parallel>], iteration_bounds = array<i64: 1>, scalar_prefetch = 0 : i64, scratch_operands = 0 : i64, tpu.core_type = #tpu.core_type<tc>, window_params = [{transform_indices = @transform_0, window_bounds = array<i64: 8, 16>}, {pipeline_mode = #tpu.pipeline_mode<synchronous>, transform_indices = @transform_1, window_bounds = array<i64: 16, 64>}, {pipeline_mode = #tpu.pipeline_mode<synchronous>, transform_indices = @transform_2, window_bounds = array<i64: 1, 64>}, {pipeline_mode = #tpu.pipeline_mode<synchronous>, transform_indices = @transform_3, window_bounds = array<i64: 64, 64>}, {pipeline_mode = #tpu.pipeline_mode<synchronous>, transform_indices = @transform_4, window_bounds = array<i64: 1, 64>}, {pipeline_mode = #tpu.pipeline_mode<synchronous>, transform_indices = @transform_5, window_bounds = array<i64: 64, 128>}, {pipeline_mode = #tpu.pipeline_mode<synchronous>, transform_indices = @transform_6, window_bounds = array<i64: 1, 128>}, {transform_indices = @transform_7, window_bounds = array<i64: 8, 128>}]} {
    %c0 = arith.constant 0 : index
    %c0_0 = arith.constant 0 : index
    %0 = vector.load %arg1[%c0, %c0_0] : memref<8x16xbf16, #tpu.memory_space<vmem>>, vector<8x16xbf16>
    %c0_1 = arith.constant 0 : index
    %c0_2 = arith.constant 0 : index
    %1 = vector.load %arg2[%c0_1, %c0_2] : memref<16x64xbf16, #tpu.memory_space<vmem>>, vector<16x64xbf16>
    %cst = arith.constant dense<0.000000e+00> : vector<8x64xf32>
    %2 = tpu.matmul %0, %1, %cst {dimension_numbers = #tpu.dot_dimension_numbers<[1], [0], [0], [1], [0, 0, 1, 1], [], []>} : vector<8x16xbf16>, vector<16x64xbf16>, vector<8x64xf32> -> vector<8x64xf32>
    %c0_3 = arith.constant 0 : index
    %c0_4 = arith.constant 0 : index
    %3 = vector.load %arg3[%c0_3, %c0_4] : memref<1x64xf32, #tpu.memory_space<vmem>>, vector<1x64xf32>
    %4 = vector.broadcast %3 : vector<1x64xf32> to vector<8x64xf32>
    %5 = arith.addf %2, %4 : vector<8x64xf32>
    %cst_5 = arith.constant 0.000000e+00 : f32
    %6 = vector.broadcast %cst_5 : f32 to vector<8x64xf32>
    %7 = arith.maximumf %5, %6 : vector<8x64xf32>
    %8 = arith.truncf %7 : vector<8x64xf32> to vector<8x64xbf16>
    %c0_6 = arith.constant 0 : index
    %c0_7 = arith.constant 0 : index
    %9 = vector.load %arg4[%c0_6, %c0_7] : memref<64x64xbf16, #tpu.memory_space<vmem>>, vector<64x64xbf16>
    %cst_8 = arith.constant dense<0.000000e+00> : vector<8x64xf32>
    %10 = tpu.matmul %8, %9, %cst_8 {dimension_numbers = #tpu.dot_dimension_numbers<[1], [0], [0], [1], [0, 0, 1, 1], [], []>} : vector<8x64xbf16>, vector<64x64xbf16>, vector<8x64xf32> -> vector<8x64xf32>
    %c0_9 = arith.constant 0 : index
    %c0_10 = arith.constant 0 : index
    %11 = vector.load %arg5[%c0_9, %c0_10] : memref<1x64xf32, #tpu.memory_space<vmem>>, vector<1x64xf32>
    %12 = vector.broadcast %11 : vector<1x64xf32> to vector<8x64xf32>
    %13 = arith.addf %10, %12 : vector<8x64xf32>
    %cst_11 = arith.constant 0.000000e+00 : f32
    %14 = vector.broadcast %cst_11 : f32 to vector<8x64xf32>
    %15 = arith.maximumf %13, %14 : vector<8x64xf32>
    %16 = arith.truncf %15 : vector<8x64xf32> to vector<8x64xbf16>
    %c0_12 = arith.constant 0 : index
    %c0_13 = arith.constant 0 : index
    %17 = vector.load %arg6[%c0_12, %c0_13] : memref<64x128xbf16, #tpu.memory_space<vmem>>, vector<64x128xbf16>
    %cst_14 = arith.constant dense<0.000000e+00> : vector<8x128xf32>
    %18 = tpu.matmul %16, %17, %cst_14 {dimension_numbers = #tpu.dot_dimension_numbers<[1], [0], [0], [1], [0, 0, 1, 1], [], []>} : vector<8x64xbf16>, vector<64x128xbf16>, vector<8x128xf32> -> vector<8x128xf32>
    %c0_15 = arith.constant 0 : index
    %c0_16 = arith.constant 0 : index
    %19 = vector.load %arg7[%c0_15, %c0_16] : memref<1x128xf32, #tpu.memory_space<vmem>>, vector<1x128xf32>
    %20 = vector.broadcast %19 : vector<1x128xf32> to vector<8x128xf32>
    %21 = arith.addf %18, %20 : vector<8x128xf32>
    %c0_17 = arith.constant 0 : index
    %c0_18 = arith.constant 0 : index
    %22 = vector.load %arg8[%c0_17, %c0_18] : memref<8x128xf32, #tpu.memory_space<vmem>>, vector<8x128xf32>
    tpu.vector_store %arg8[%c0_17, %c0_18], %21 {strides = array<i32>} : memref<8x128xf32, #tpu.memory_space<vmem>>, vector<8x128xf32>,
    return
  }
  func.func @transform_0(%arg0: i32) -> (i32, i32) {
    %c0_i32 = arith.constant 0 : i32
    %c0_i32_0 = arith.constant 0 : i32
    return %arg0, %c0_i32 : i32, i32
  }
  func.func @transform_1(%arg0: i32) -> (i32, i32) {
    %c0_i32 = arith.constant 0 : i32
    %c0_i32_0 = arith.constant 0 : i32
    %c0_i32_1 = arith.constant 0 : i32
    return %c0_i32, %c0_i32_0 : i32, i32
  }
  func.func @transform_2(%arg0: i32) -> (i32, i32) {
    %c0_i32 = arith.constant 0 : i32
    %c0_i32_0 = arith.constant 0 : i32
    %c0_i32_1 = arith.constant 0 : i32
    return %c0_i32, %c0_i32_0 : i32, i32
  }
  func.func @transform_3(%arg0: i32) -> (i32, i32) {
    %c0_i32 = arith.constant 0 : i32
    %c0_i32_0 = arith.constant 0 : i32
    %c0_i32_1 = arith.constant 0 : i32
    return %c0_i32, %c0_i32_0 : i32, i32
  }
  func.func @transform_4(%arg0: i32) -> (i32, i32) {
    %c0_i32 = arith.constant 0 : i32
    %c0_i32_0 = arith.constant 0 : i32
    %c0_i32_1 = arith.constant 0 : i32
    return %c0_i32, %c0_i32_0 : i32, i32
  }
  func.func @transform_5(%arg0: i32) -> (i32, i32) {
    %c0_i32 = arith.constant 0 : i32
    %c0_i32_0 = arith.constant 0 : i32
    %c0_i32_1 = arith.constant 0 : i32
    return %c0_i32, %c0_i32_0 : i32, i32
  }
  func.func @transform_6(%arg0: i32) -> (i32, i32) {
    %c0_i32 = arith.constant 0 : i32
    %c0_i32_0 = arith.constant 0 : i32
    %c0_i32_1 = arith.constant 0 : i32
    return %c0_i32, %c0_i32_0 : i32, i32
  }
  func.func @transform_7(%arg0: i32) -> (i32, i32) {
    %c0_i32 = arith.constant 0 : i32
    %c0_i32_0 = arith.constant 0 : i32
    return %arg0, %c0_i32 : i32, i32
  }
}

</mosaic_0001>

<llo_original>
// kernel: tpu_custom_call.1
$region0: #{tpu_custom_call.1}
  #allocation0 [shape = 'u32[]', space=smem, size = 0x4, offset = 0x4, fixed_abs, tag = 'smem constant byte address 0x4 - core index']
  #allocation1 [shape = 'u32[72,128]{1,0:T(1,128)}', space=vmem, size = 0x9000, scoped, tag = 'internal scratch']
  %s0 = inlined_call_operand.hbm [shape: bf16[8,16], index: 0, kind: input, shape index: {}]
  %s1 = inlined_call_operand.hbm [shape: bf16[16,64], index: 1, kind: input, shape index: {}]
  %s2 = inlined_call_operand.vmem [shape: f32[1,64], index: 2, kind: input, shape index: {}]
  %s3 = inlined_call_operand.hbm [shape: bf16[64,64], index: 3, kind: input, shape index: {}]
  %s4 = inlined_call_operand.vmem [shape: f32[1,64], index: 4, kind: input, shape index: {}]
  %s5 = inlined_call_operand.hbm [shape: bf16[64,128], index: 5, kind: input, shape index: {}]
  %s6 = inlined_call_operand.vmem [shape: f32[1,128], index: 6, kind: input, shape index: {}]
  %s7 = inlined_call_operand.hbm [shape: f32[8,128], index: 7, kind: output, shape index: {}]
  %s8 = sld [smem:[#allocation0]]
  $region54: #{tpu_custom_call.1} parent=0
    _
  %s10 = ssub.s32 1, %s8
  %s11 = scalar_select 0, %s10, %s8
  $region1: #{tpu_custom_call.1} parent=0
    #allocation2 [shape = 'u8[2048]{0}', space=vmem, size = 0x800, scoped, tag = 'input window, operand 0, single buffered']
    #allocation3 [shape = 's32[1]{0}', space=sflag, size = 0x4, scoped, tag = 'scoped memory for tpu_custom_call.1']
    #allocation4 [shape = 's32[1]{0}', space=sflag, size = 0x4, scoped, tag = 'scoped memory for tpu_custom_call.1']
    #allocation5 [shape = 'u8[4096]{0}', space=vmem, size = 0x1000, scoped, tag = 'input window, operand 1, single buffered']
    #allocation6 [shape = 's32[1]{0}', space=sflag, size = 0x4, scoped, tag = 'scoped memory for tpu_custom_call.1']
    #allocation7 [shape = 'u8[16384]{0}', space=vmem, size = 0x4000, scoped, tag = 'input window, operand 3, single buffered']
    #allocation8 [shape = 'u8[16384]{0}', space=vmem, size = 0x4000, scoped, tag = 'input window, operand 5, single buffered']
    #allocation9 [shape = 's32[1]{0}', space=sflag, size = 0x4, scoped, tag = 'scoped memory for tpu_custom_call.1']
    #allocation10 [shape = 'u8[4096]{0}', space=vmem, size = 0x1000, scoped, tag = 'output window, operand 0, single buffered']
    %12 = vsyncpa [#allocation3], 0
    %13 = vsyncpa [#allocation6], 0
    %14 = vsyncpa [#allocation9], 0
    %15 = vsyncpa [#allocation4], 0
    // Predicated region
    $region2: #{tpu_custom_call.1} parent=1 // pred_check
      _
    $region3: #{tpu_custom_call.1} parent=1 // pred_check_branch
      %17 = sbr.rel (0) target = $region5
    $region4: #{tpu_custom_call.1} parent=1 // pred_region
      %19 = vsyncadd [#allocation3], 0
      %s21 = sshll.u32 %s0, 4
      %s22 = int_to_ptr.hbm [resolvable:$true] %s21
      %s23 = sshll.u32 [#allocation2], 4
      %s24 = int_to_ptr.vmem [resolvable:$true] %s23
      %26 = dma.hbm_to_vmem [thread:$0]  %s22, 64, %s24, [#allocation3]
    $region5: #{tpu_custom_call.1} parent=1 // pred_fallthru
      _
    // Predicated region
    $region6: #{tpu_custom_call.1} parent=1 // pred_check
      _
    $region7: #{tpu_custom_call.1} parent=1 // pred_check_branch
      %28 = sbr.rel (0) target = $region9
    $region8: #{tpu_custom_call.1} parent=1 // pred_region
      %30 = vsyncadd [#allocation6], 0
      %s31 = sshll.u32 %s1, 4
      %s32 = int_to_ptr.hbm [resolvable:$true] %s31
      %s33 = sshll.u32 [#allocation5], 4
      %s34 = int_to_ptr.vmem [resolvable:$true] %s33
      %39 = dma.hbm_to_vmem [thread:$0]  %s32, 128, %s34, [#allocation6], 64, 64, 4
    $region9: #{tpu_custom_call.1} parent=1 // pred_fallthru
      _
    // Predicated region
    $region10: #{tpu_custom_call.1} parent=1 // pred_check
      _
    $region11: #{tpu_custom_call.1} parent=1 // pred_check_branch
      %41 = sbr.rel (0) target = $region13
    $region12: #{tpu_custom_call.1} parent=1 // pred_region
      _
    $region13: #{tpu_custom_call.1} parent=1 // pred_fallthru
      _
    // Predicated region
    $region14: #{tpu_custom_call.1} parent=1 // pred_check
      _
    $region15: #{tpu_custom_call.1} parent=1 // pred_check_branch
      %43 = sbr.rel (0) target = $region17
    $region16: #{tpu_custom_call.1} parent=1 // pred_region
      %45 = vsyncadd [#allocation6], 0
      %s46 = sshll.u32 %s3, 4
      %s47 = int_to_ptr.hbm [resolvable:$true] %s46
      %s48 = sshll.u32 [#allocation7], 4
      %s49 = int_to_ptr.vmem [resolvable:$true] %s48
      %54 = dma.hbm_to_vmem [thread:$0]  %s47, 512, %s49, [#allocation6], 64, 64, 4
    $region17: #{tpu_custom_call.1} parent=1 // pred_fallthru
      _
    // Predicated region
    $region18: #{tpu_custom_call.1} parent=1 // pred_check
      _
    $region19: #{tpu_custom_call.1} parent=1 // pred_check_branch
      %56 = sbr.rel (0) target = $region21
    $region20: #{tpu_custom_call.1} parent=1 // pred_region
      _
    $region21: #{tpu_custom_call.1} parent=1 // pred_fallthru
      _
    // Predicated region
    $region22: #{tpu_custom_call.1} parent=1 // pred_check
      _
    $region23: #{tpu_custom_call.1} parent=1 // pred_check_branch
      %58 = sbr.rel (0) target = $region25
    $region24: #{tpu_custom_call.1} parent=1 // pred_region
      %60 = vsyncadd [#allocation9], 0
      %s61 = sshll.u32 %s5, 4
      %s62 = int_to_ptr.hbm [resolvable:$true] %s61
      %s63 = sshll.u32 [#allocation8], 4
      %s64 = int_to_ptr.vmem [resolvable:$true] %s63
      %69 = dma.hbm_to_vmem [thread:$0]  %s62, 512, %s64, [#allocation9], 64, 64, 4
    $region25: #{tpu_custom_call.1} parent=1 // pred_fallthru
      _
    // Predicated region
    $region26: #{tpu_custom_call.1} parent=1 // pred_check
      _
    $region27: #{tpu_custom_call.1} parent=1 // pred_check_branch
      %71 = sbr.rel (0) target = $region29
    $region28: #{tpu_custom_call.1} parent=1 // pred_region
      _
    $region29: #{tpu_custom_call.1} parent=1 // pred_fallthru
      _
    // Predicated region
    $region30: #{tpu_custom_call.1} parent=1 // pred_check
      _
    $region31: #{tpu_custom_call.1} parent=1 // pred_check_branch
      %73 = sbr.rel (0) target = $region33
    $region32: #{tpu_custom_call.1} parent=1 // pred_region
      %75 = dma.done [#allocation3], 64
    $region33: #{tpu_custom_call.1} parent=1 // pred_fallthru
      _
    // Predicated region
    $region34: #{tpu_custom_call.1} parent=1 // pred_check
      _
    $region35: #{tpu_custom_call.1} parent=1 // pred_check_branch
      %77 = sbr.rel (0) target = $region37
    $region36: #{tpu_custom_call.1} parent=1 // pred_region
      %79 = dma.done [#allocation6], 128
    $region37: #{tpu_custom_call.1} parent=1 // pred_fallthru
      _
    // Predicated region
    $region38: #{tpu_custom_call.1} parent=1 // pred_check
      _
    $region39: #{tpu_custom_call.1} parent=1 // pred_check_branch
      %81 = sbr.rel (0) target = $region41
    $region40: #{tpu_custom_call.1} parent=1 // pred_region
      %83 = dma.done [#allocation6], 512
    $region41: #{tpu_custom_call.1} parent=1 // pred_fallthru
      _
    // Predicated region
    $region42: #{tpu_custom_call.1} parent=1 // pred_check
      _
    $region43: #{tpu_custom_call.1} parent=1 // pred_check_branch
      %85 = sbr.rel (0) target = $region45
    $region44: #{tpu_custom_call.1} parent=1 // pred_region
      %87 = dma.done [#allocation9], 512
    $region45: #{tpu_custom_call.1} parent=1 // pred_fallthru
      _
    %v89 = vld [vmem:[#allocation2] sm:$0xf]
    %v90 = vld [vmem:[#allocation5] sm:$0xf]
    %v91 = vld [vmem:[#allocation5 + $0x4] sm:$0xf]
    %v92 = vld [vmem:[%s2] sm:$0x1]
    %v94 = vperm.slane %v92, 0
    %v98 = vunpack.c.l.b16 %v90
    %v99 = vunpack.c.l.b16 %v91
    %v100 = vpack.c.b16 %v99, %v98
    %vm102 = vcmask 130048
    %v104 = vsel %vm102, %v89, 0
    %106 = vmatpush.bf16.msra.mxu0 0
    %107 = vmatpush.bf16.msra.mxu0 0
    %108 = vmatpush.bf16.msra.mxu0 0
    %109 = vmatpush.bf16.msra.mxu0 0
    %110 = vmatpush.bf16.msra.mxu0 0
    %111 = vmatpush.bf16.msra.mxu0 0
    %112 = vmatpush.bf16.msra.mxu0 0
    %113 = vmatpush.bf16.msra.mxu0 %v100
    %114 = vmatmul.bf16.gmra.mxu0 %v104
    %v115 = vpop.f32.mrf.mxu0
    %v116 = vadd.f32 %v94, %v115
    %v117 = vpop.f32.mrf.mxu0
    %118 = vdwg.mxu0
    %v119 = vmax.f32 %v116, 0.0
    %v120 = vpack.c.bf16 %v119, %v119
    %v121 = vld [vmem:[#allocation7] sm:$0xf]
    %v122 = vld [vmem:[#allocation7 + $0x4] sm:$0xf]
    %v123 = vld [vmem:[#allocation7 + $0x8] sm:$0xf]
    %v124 = vld [vmem:[#allocation7 + $0xc] sm:$0xf]
    %v125 = vld [vmem:[#allocation7 + $0x10] sm:$0xf]
    %v126 = vld [vmem:[#allocation7 + $0x14] sm:$0xf]
    %v127 = vld [vmem:[#allocation7 + $0x18] sm:$0xf]
    %v128 = vld [vmem:[#allocation7 + $0x1c] sm:$0xf]
    %v129 = vld [vmem:[%s4] sm:$0x1]
    %v131 = vperm.slane %v129, 0
    %v141 = vunpack.c.l.b16 %v121
    %v142 = vunpack.c.l.b16 %v122
    %v143 = vunpack.c.l.b16 %v123
    %v144 = vunpack.c.l.b16 %v124
    %v145 = vunpack.c.l.b16 %v125
    %v146 = vunpack.c.l.b16 %v126
    %v147 = vunpack.c.l.b16 %v127
    %v148 = vunpack.c.l.b16 %v128
    %v149 = vpack.c.b16 %v142, %v141
    %v150 = vpack.c.b16 %v144, %v143
    %v151 = vpack.c.b16 %v146, %v145
    %v152 = vpack.c.b16 %v148, %v147
    %vm157 = vcmask 523264
    %v159 = vsel %vm157, %v120, 0
    %161 = vmatpush.bf16.msra.mxu0 0
    %162 = vmatpush.bf16.msra.mxu0 0
    %163 = vmatpush.bf16.msra.mxu0 0
    %164 = vmatpush.bf16.msra.mxu0 0
    %165 = vmatpush.bf16.msra.mxu0 %v152
    %166 = vmatpush.bf16.msra.mxu0 %v151
    %167 = vmatpush.bf16.msra.mxu0 %v150
    %168 = vmatpush.bf16.msra.mxu0 %v149
    %169 = vmatmul.bf16.gmra.mxu0 %v159
    %v170 = vpop.f32.mrf.mxu0
    %v171 = vadd.f32 %v131, %v170
    %v172 = vpop.f32.mrf.mxu0
    %173 = vdwg.mxu0
    %v174 = vmax.f32 %v171, 0.0
    %v175 = vpack.c.bf16 %v174, %v174
    %v176 = vld [vmem:[#allocation8] sm:$0xf]
    %v177 = vld [vmem:[#allocation8 + $0x4] sm:$0xf]
    %v178 = vld [vmem:[#allocation8 + $0x8] sm:$0xf]
    %v179 = vld [vmem:[#allocation8 + $0xc] sm:$0xf]
    %v180 = vld [vmem:[#allocation8 + $0x10] sm:$0xf]
    %v181 = vld [vmem:[#allocation8 + $0x14] sm:$0xf]
    %v182 = vld [vmem:[#allocation8 + $0x18] sm:$0xf]
    %v183 = vld [vmem:[#allocation8 + $0x1c] sm:$0xf]
    %v184 = vld [vmem:[%s6] sm:$0x1]
    %v186 = vperm.slane %v184, 0
    %v196 = vunpack.c.l.b16 %v176
    %v197 = vunpack.c.l.b16 %v177
    %v198 = vunpack.c.l.b16 %v178
    %v199 = vunpack.c.l.b16 %v179
    %v200 = vunpack.c.l.b16 %v180
    %v201 = vunpack.c.l.b16 %v181
    %v202 = vunpack.c.l.b16 %v182
    %v203 = vunpack.c.l.b16 %v183
    %v204 = vpack.c.b16 %v197, %v196
    %v205 = vpack.c.b16 %v199, %v198
    %v206 = vpack.c.b16 %v201, %v200
    %v207 = vpack.c.b16 %v203, %v202
    %v213 = vsel %vm157, %v175, 0
    %215 = vmatpush.bf16.msra.mxu0 0
    %216 = vmatpush.bf16.msra.mxu0 0
    %217 = vmatpush.bf16.msra.mxu0 0
    %218 = vmatpush.bf16.msra.mxu0 0
    %219 = vmatpush.bf16.msra.mxu0 %v207
    %220 = vmatpush.bf16.msra.mxu0 %v206
    %221 = vmatpush.bf16.msra.mxu0 %v205
    %222 = vmatpush.bf16.msra.mxu0 %v204
    %223 = vmatmul.bf16.gmra.mxu0 %v213
    %v224 = vpop.f32.mrf.mxu0
    %v225 = vadd.f32 %v186, %v224
    %v226 = vpop.f32.mrf.mxu0
    %227 = vdwg.mxu0
    %228 = vst [vmem:[#allocation10] sm:$0xff] %v225
    // Predicated region
    $region46: #{tpu_custom_call.1} parent=1 // pred_check
      _
    $region47: #{tpu_custom_call.1} parent=1 // pred_check_branch
      %230 = sbr.rel (0) target = $region49
    $region48: #{tpu_custom_call.1} parent=1 // pred_region
      %232 = vsyncadd [#allocation4], 0
      %s234 = sshll.u32 [#allocation10], 4
      %s235 = int_to_ptr.vmem [resolvable:$true] %s234
      %s236 = sshll.u32 %s7, 4
      %s237 = int_to_ptr.hbm [resolvable:$true] %s236
      %239 = dma.vmem_to_hbm [thread:$0]  %s235, 128, %s237, [#allocation4]
    $region49: #{tpu_custom_call.1} parent=1 // pred_fallthru
      _
    // Predicated region
    $region50: #{tpu_custom_call.1} parent=1 // pred_check
      _
    $region51: #{tpu_custom_call.1} parent=1 // pred_check_branch
      %241 = sbr.rel (0) target = $region53
    $region52: #{tpu_custom_call.1} parent=1 // pred_region
      %243 = dma.done [#allocation4], 128
    $region53: #{tpu_custom_call.1} parent=1 // pred_fallthru
      _
    %244 = vsyncpa [#allocation3], 1
    %245 = vsyncpa [#allocation6], 1
    %246 = vsyncpa [#allocation9], 1
    %247 = vsyncpa [#allocation4], 1

</llo_original>
